<compile_context>
chip_gen: v6e
topology: v6e:2x2x1
jax: 0.10.0
libtpu: 0.0.40
codegen_flags: <defaults>
</compile_context>

<pallas_src>
import functools

import jax
import jax.numpy as jnp
from jax.experimental import pallas as pl
from jax.experimental.pallas import tpu as pltpu


def _row_losses(pred, cand, start, batch, tile_b):
    """Per-row partial-label NLL: sum(log_softmax(pred) * cand, axis=1)."""
    pred = pred.astype(jnp.float32)           # (tile_b, C)
    cand = cand.astype(jnp.float32)           # (tile_b, C)

    rows = start + jax.lax.broadcasted_iota(jnp.int32, (tile_b, 1), 0)
    valid = rows < batch                      # (tile_b, 1)

    # Zero ragged-tail rows *before* exp so garbage can't produce inf/NaN.
    pred = jnp.where(valid, pred, 0.0)
    cand = jnp.where(valid, cand, 0.0)

    row_max = jnp.max(pred, axis=1, keepdims=True)                   # (tile_b, 1)
    shifted = pred - row_max
    lse = jnp.log(jnp.sum(jnp.exp(shifted), axis=1, keepdims=True))  # (tile_b, 1)
    logp = shifted - lse                                             # log_softmax
    row_loss = jnp.sum(logp * cand, axis=1, keepdims=True)           # (tile_b, 1)
    return jnp.where(valid, row_loss, 0.0)


def _cls_loss_resident_kernel(idx_ref, pred_ref, cand_ref, out_ref, cand_buf,
                              *, batch, tile_b):
    """candidate (N, C) is VMEM-resident across the whole grid (constant block)."""
    i = pl.program_id(0)
    start = i * tile_b

    # In-VMEM gather: candidate[index[start + r], :] -> cand_buf[r, :].
    # No DMA descriptors / semaphores / waits — pure VMEM row copies.
    @pl.loop(0, tile_b)
    def _gather(r):
        g = idx_ref[start + r]
        cand_buf[pl.ds(r, 1), :] = cand_ref[pl.ds(g, 1), :]

    out_ref[...] = _row_losses(pred_ref[...], cand_buf[...], start, batch, tile_b)


def _cls_loss_pregathered_kernel(pred_ref, cand_ref, out_ref, *, batch, tile_b):
    """Fallback path: candidate rows were gathered outside the kernel by XLA."""
    i = pl.program_id(0)
    out_ref[...] = _row_losses(pred_ref[...], cand_ref[...], i * tile_b,
                               batch, tile_b)


def _vmem_capacity_bytes():
    try:
        info = pltpu.get_tpu_info()
        return int(getattr(info, "vmem_capacity_bytes", 64 * 2**20))
    except Exception:
        return 64 * 2**20          # conservative: v7x per-TensorCore VMEM


def _pick_tile_b(batch, per_row_bytes, fixed_bytes, budget_bytes):
    avail = max(budget_bytes - fixed_bytes, 8 * per_row_bytes)
    t = avail // max(per_row_bytes, 1)
    t = max(8, min(int(t), 2048))
    t = (t // 8) * 8
    # v7x megacore: keep >= 2 grid steps when the batch is large enough so the
    # "parallel" axis can actually be sharded across the two TensorCores.
    if batch >= 256:
        t = min(t, ((batch // 2) // 8) * 8)
    padded_batch = ((batch + 7) // 8) * 8
    return max(8, min(t, padded_batch))


def cls_loss_forward(prediction, candidate, index, *, tile_b=None,
                     force_pregather=False):
    """Pallas implementation of ClsLoss.forward.

    prediction: (B, C) float — classifier logits (pre-log-softmax, as in torch).
    candidate:  (N, C) float — candidate-label buffer (self.candidate); lower
                precision dtypes (bf16 / int8 0-1 masks) are accepted and
                upcast in-kernel, cutting candidate HBM/VMEM traffic.
    index:      (B,)   int   — rows of `candidate` for this batch.
    Returns a scalar f32 loss.
    """
    B, C = prediction.shape
    N, C2 = candidate.shape
    assert C == C2, (prediction.shape, candidate.shape)

    vmem_capacity = _vmem_capacity_bytes()
    vmem_budget = int(vmem_capacity * 0.45)       # headroom for compiler temps
    vmem_limit = int(vmem_capacity * 0.75)

    n_pad = ((N + 7) // 8) * 8
    # Assume the resident block may still be double-buffered by the pipeline.
    resident_bytes = 2 * n_pad * C * candidate.dtype.itemsize
    use_resident = (not force_pregather) and (resident_bytes <= vmem_budget // 2)

    if use_resident:
        per_row = (2 * C * prediction.dtype.itemsize   # double-buffered pred tile
                   + C * candidate.dtype.itemsize      # gather scratch
                   + 2 * 4)                            # double-buffered out rows
        fixed = resident_bytes
    else:
        per_row = (2 * C * prediction.dtype.itemsize
                   + 2 * C * candidate.dtype.itemsize  # double-buffered cand tile
                   + 2 * 4)
        fixed = 0

    if tile_b is None:
        tile_b = _pick_tile_b(B, per_row, fixed, vmem_budget)
    assert tile_b > 0 and tile_b % 8 == 0, tile_b

    num_tiles = pl.cdiv(B, tile_b)
    padded_b = num_tiles * tile_b

    # Clip so a bad index can never become an OOB access; pad the ragged tail
    # with row 0 (those rows are masked out in-kernel anyway).
    idx = jnp.clip(jnp.asarray(index, jnp.int32), 0, N - 1)
    if padded_b != B:
        idx = jnp.pad(idx, (0, padded_b - B))

    compiler_params = pltpu.CompilerParams(
        dimension_semantics=("parallel",),
        vmem_limit_bytes=vmem_limit,
    )

    if use_resident:
        kernel = functools.partial(_cls_loss_resident_kernel, batch=B,
                                   tile_b=tile_b)
        grid_spec = pltpu.PrefetchScalarGridSpec(
            num_scalar_prefetch=1,
            grid=(num_tiles,),
            in_specs=[
                pl.BlockSpec((tile_b, C), lambda i, idx_ref: (i, 0)),
                # Whole candidate buffer, constant block index -> DMA'd once,
                # VMEM-resident across the grid.
                pl.BlockSpec((N, C), lambda i, idx_ref: (0, 0)),
            ],
            out_specs=pl.BlockSpec((tile_b, 1), lambda i, idx_ref: (i, 0)),
            scratch_shapes=[pltpu.VMEM((tile_b, C), candidate.dtype)],
        )
        cost = pl.CostEstimate(
            flops=6 * B * C,
            transcendentals=B * C + B,
            bytes_accessed=(B * C * prediction.dtype.itemsize
                            + N * C * candidate.dtype.itemsize
                            + padded_b * 4 + padded_b * 4),
        )
        row_losses = pl.pallas_call(
            kernel,
            out_shape=jax.ShapeDtypeStruct((padded_b, 1), jnp.float32),
            grid_spec=grid_spec,
            compiler_params=compiler_params,
            cost_estimate=cost,
        )(idx, prediction, candidate)
    else:
        # Candidate buffer too big for VMEM: gather the needed rows once with
        # XLA and stream them as a normal auto-pipelined input.
        cand_g = jnp.take(candidate, idx, axis=0)          # (padded_b, C)
        kernel = functools.partial(_cls_loss_pregathered_kernel, batch=B,
                                   tile_b=tile_b)
        grid_spec = pltpu.PrefetchScalarGridSpec(
            num_scalar_prefetch=0,
            grid=(num_tiles,),
            in_specs=[
                pl.BlockSpec((tile_b, C), lambda i: (i, 0)),
                pl.BlockSpec((tile_b, C), lambda i: (i, 0)),
            ],
            out_specs=pl.BlockSpec((tile_b, 1), lambda i: (i, 0)),
        )
        cost = pl.CostEstimate(
            flops=6 * B * C,
            transcendentals=B * C + B,
            bytes_accessed=(B * C * prediction.dtype.itemsize
                            + padded_b * C * candidate.dtype.itemsize
                            + padded_b * 4),
        )
        row_losses = pl.pallas_call(
            kernel,
            out_shape=jax.ShapeDtypeStruct((padded_b, 1), jnp.float32),
            grid_spec=grid_spec,
            compiler_params=compiler_params,
            cost_estimate=cost,
        )(prediction, cand_g)

    # average_loss = -masked_pred.sum(dim=1).mean()  (padded rows contribute 0)
    return -(jnp.sum(row_losses) / B)


def _reference(prediction, candidate, index):
    # Pure-JAX reference mirroring the PyTorch code.
    logp = jax.nn.log_softmax(prediction.astype(jnp.float32), axis=1)
    masked = logp * candidate[index, :].astype(jnp.float32)
    return -jnp.mean(jnp.sum(masked, axis=1))


if __name__ == "__main__":
    key = jax.random.PRNGKey(0)
    k_pred, k_cand, k_idx, k_pred2, k_idx2 = jax.random.split(key, 5)

    B, C, N = 16, 128, 64  # batch, num classes (lane-aligned), candidate rows

    prediction = jax.random.normal(k_pred, (B, C), dtype=jnp.float32)

    # Deterministic synthetic candidate buffer: 0/1 partial-label mask,
    # guaranteed non-empty per row (ground-truth label forced on).
    cand_bits = (jax.random.uniform(k_cand, (N, C)) < 0.2).astype(jnp.float32)
    gt = jnp.arange(N) % C
    candidate = jnp.maximum(cand_bits, jax.nn.one_hot(gt, C, dtype=jnp.float32))

    index = jax.random.randint(k_idx, (B,), 0, N, dtype=jnp.int32)
    ref = _reference(prediction, candidate, index)

    # 1) Primary path: VMEM-resident candidate, multi-step grid.
    loss = jax.block_until_ready(
        cls_loss_forward(prediction, candidate, index, tile_b=8))
    assert jnp.allclose(loss, ref, rtol=1e-5, atol=1e-5), (loss, ref)

    # 2) Auto tile picking (generation-aware VMEM budget; single-step grid here).
    loss_auto = jax.block_until_ready(
        cls_loss_forward(prediction, candidate, index))
    assert jnp.allclose(loss_auto, ref, rtol=1e-5, atol=1e-5), (loss_auto, ref)

    # 3) Ragged batch (B not a multiple of tile_b): exercises padded-row masking.
    B2 = 12
    prediction2 = jax.random.normal(k_pred2, (B2, C), dtype=jnp.float32)
    index2 = jax.random.randint(k_idx2, (B2,), 0, N, dtype=jnp.int32)
    ref2 = _reference(prediction2, candidate, index2)
    loss2 = jax.block_until_ready(
        cls_loss_forward(prediction2, candidate, index2, tile_b=8))
    assert jnp.allclose(loss2, ref2, rtol=1e-5, atol=1e-5), (loss2, ref2)

    # 4) Fallback path (used when the candidate buffer does not fit VMEM).
    loss3 = jax.block_until_ready(
        cls_loss_forward(prediction, candidate, index, tile_b=8,
                         force_pregather=True))
    assert jnp.allclose(loss3, ref, rtol=1e-5, atol=1e-5), (loss3, ref)

    print("KERNEL_OK")
</pallas_src>

<mosaic_0001>
module attributes {stable_mosaic.version = 11 : i64} {
  func.func @_cls_loss_resident_kernel(%arg0: i32, %arg1: memref<16xi32, #tpu.memory_space<smem>>, %arg2: memref<8x128xf32, #tpu.memory_space<vmem>>, %arg3: memref<64x128xf32, #tpu.memory_space<vmem>>, %arg4: memref<8x1xf32, #tpu.memory_space<vmem>>, %arg5: memref<8x128xf32, #tpu.memory_space<vmem>>) attributes {dimension_semantics = [#tpu.dimension_semantics<parallel>], iteration_bounds = array<i64: 2>, scalar_prefetch = 1 : i64, scratch_operands = 1 : i64, tpu.core_type = #tpu.core_type<tc>, window_params = [{transform_indices = @transform_0, window_bounds = array<i64: 8, 128>}, {pipeline_mode = #tpu.pipeline_mode<synchronous>, transform_indices = @transform_1, window_bounds = array<i64: 64, 128>}, {transform_indices = @transform_2, window_bounds = array<i64: 8, 1>}]} {
    %c8_i32 = arith.constant 8 : i32
    %0 = arith.muli %arg0, %c8_i32 : i32
    %c0_i32 = arith.constant 0 : i32
    %c8_i32_0 = arith.constant 8 : i32
    %1 = arith.addi %c0_i32, %c8_i32_0 : i32
    %c1_i32 = arith.constant 1 : i32
    scf.for %arg6 = %c0_i32 to %1 step %c1_i32  : i32 {
      %c1_i32_12 = arith.constant 1 : i32
      %33 = arith.muli %arg6, %c1_i32_12 : i32
      %c0_i32_13 = arith.constant 0 : i32
      %34 = arith.addi %c0_i32_13, %33 : i32
      %35 = arith.addi %0, %34 : i32
      %36 = arith.index_cast %35 : i32 to index
      %37 = memref.load %arg1[%36] : memref<16xi32, #tpu.memory_space<smem>>
      %38 = arith.index_cast %37 : i32 to index
      %c0_14 = arith.constant 0 : index
      %39 = vector.load %arg3[%38, %c0_14] : memref<64x128xf32, #tpu.memory_space<vmem>>, vector<1x128xf32>
      %40 = arith.index_cast %34 : i32 to index
      %c0_15 = arith.constant 0 : index
      %41 = vector.load %arg5[%40, %c0_15] : memref<8x128xf32, #tpu.memory_space<vmem>>, vector<1x128xf32>
      tpu.vector_store %arg5[%40, %c0_15], %39 {strides = array<i32>} : memref<8x128xf32, #tpu.memory_space<vmem>>, vector<1x128xf32>,
    }
    %c8_i32_1 = arith.constant 8 : i32
    %c0 = arith.constant 0 : index
    %c0_2 = arith.constant 0 : index
    %2 = vector.load %arg2[%c0, %c0_2] : memref<8x128xf32, #tpu.memory_space<vmem>>, vector<8x128xf32>
    %c0_3 = arith.constant 0 : index
    %c0_4 = arith.constant 0 : index
    %3 = vector.load %arg5[%c0_3, %c0_4] : memref<8x128xf32, #tpu.memory_space<vmem>>, vector<8x128xf32>
    %4 = tpu.iota {dimensions = array<i32: 0>} : vector<8x1xi32>
    %5 = vector.broadcast %0 : i32 to vector<8x1xi32>
    %6 = arith.addi %5, %4 : vector<8x1xi32>
    %c16_i32 = arith.constant 16 : i32
    %7 = vector.broadcast %c16_i32 : i32 to vector<8x1xi32>
    %8 = arith.cmpi slt, %6, %7 : vector<8x1xi32>
    %cst = arith.constant 0.000000e+00 : f32
    %9 = vector.shape_cast %8 : vector<8x1xi1> to vector<8x1xi1>
    %10 = vector.broadcast %9 : vector<8x1xi1> to vector<8x128xi1>
    %11 = vector.broadcast %cst : f32 to vector<8x128xf32>
    %12 = arith.select %10, %2, %11 : vector<8x128xi1>, vector<8x128xf32>
    %cst_5 = arith.constant 0.000000e+00 : f32
    %13 = vector.shape_cast %8 : vector<8x1xi1> to vector<8x1xi1>
    %14 = vector.broadcast %13 : vector<8x1xi1> to vector<8x128xi1>
    %15 = vector.broadcast %cst_5 : f32 to vector<8x128xf32>
    %16 = arith.select %14, %3, %15 : vector<8x128xi1>, vector<8x128xf32>
    %cst_6 = arith.constant dense<0xFF800000> : vector<8xf32>
    %17 = vector.multi_reduction <maximumf>, %12, %cst_6 [1] : vector<8x128xf32> to vector<8xf32>
    %18 = vector.shape_cast %17 : vector<8xf32> to vector<8x1xf32>
    %19 = vector.broadcast %18 : vector<8x1xf32> to vector<8x128xf32>
    %20 = arith.subf %12, %19 : vector<8x128xf32>
    %21 = math.exp %20 : vector<8x128xf32>
    %cst_7 = arith.constant dense<0.000000e+00> : vector<8xf32>
    %22 = vector.multi_reduction <add>, %21, %cst_7 [1] : vector<8x128xf32> to vector<8xf32>
    %23 = vector.shape_cast %22 : vector<8xf32> to vector<8x1xf32>
    %24 = math.log %23 : vector<8x1xf32>
    %25 = vector.broadcast %24 : vector<8x1xf32> to vector<8x128xf32>
    %26 = arith.subf %20, %25 : vector<8x128xf32>
    %27 = arith.mulf %26, %16 : vector<8x128xf32>
    %cst_8 = arith.constant dense<0.000000e+00> : vector<8xf32>
    %28 = vector.multi_reduction <add>, %27, %cst_8 [1] : vector<8x128xf32> to vector<8xf32>
    %29 = vector.shape_cast %28 : vector<8xf32> to vector<8x1xf32>
    %cst_9 = arith.constant 0.000000e+00 : f32
    %30 = vector.broadcast %cst_9 : f32 to vector<8x1xf32>
    %31 = arith.select %8, %29, %30 : vector<8x1xi1>, vector<8x1xf32>
    %c0_10 = arith.constant 0 : index
    %c0_11 = arith.constant 0 : index
    %32 = vector.load %arg4[%c0_10, %c0_11] : memref<8x1xf32, #tpu.memory_space<vmem>>, vector<8x1xf32>
    tpu.vector_store %arg4[%c0_10, %c0_11], %31 {strides = array<i32>} : memref<8x1xf32, #tpu.memory_space<vmem>>, vector<8x1xf32>,
    return
  }
  func.func @transform_0(%arg0: i32, %arg1: memref<16xi32, #tpu.memory_space<smem>>) -> (i32, i32) {
    %c0_i32 = arith.constant 0 : i32
    %c0_i32_0 = arith.constant 0 : i32
    return %arg0, %c0_i32 : i32, i32
  }
  func.func @transform_1(%arg0: i32, %arg1: memref<16xi32, #tpu.memory_space<smem>>) -> (i32, i32) {
    %c0_i32 = arith.constant 0 : i32
    %c0_i32_0 = arith.constant 0 : i32
    %c0_i32_1 = arith.constant 0 : i32
    return %c0_i32, %c0_i32_0 : i32, i32
  }
  func.func @transform_2(%arg0: i32, %arg1: memref<16xi32, #tpu.memory_space<smem>>) -> (i32, i32) {
    %c0_i32 = arith.constant 0 : i32
    %c0_i32_0 = arith.constant 0 : i32
    return %arg0, %c0_i32 : i32, i32
  }
}

</mosaic_0001>

<llo_original>
// kernel: tpu_custom_call.1
$region0: #{tpu_custom_call.1}
  #allocation0 [shape = 'u32[]', space=smem, size = 0x4, offset = 0x4, fixed_abs, tag = 'smem constant byte address 0x4 - core index']
  #allocation1 [shape = 'u32[144,128]{1,0:T(1,128)}', space=vmem, size = 0x12000, scoped, tag = 'internal scratch']
  #allocation2 [shape = 'f32[8,128]{1,0:T(8,128)}', space=vmem, size = 0x1000, scoped, tag = 'scratch operand']
  #allocation3 [shape = 's32[1]{0}', space=sflag, size = 0x4, scoped, tag = 'scoped memory for tpu_custom_call.1']
  #allocation4 [shape = 'u8[512]{0}', space=smem, size = 0x200, scoped, tag = 'prefetched SMEM operand 0']
  %s0 = inlined_call_operand.hbm [shape: s32[16], index: 0, kind: input, shape index: {}]
  %s1 = inlined_call_operand.hbm [shape: f32[16,128], index: 1, kind: input, shape index: {}]
  %s2 = inlined_call_operand.hbm [shape: f32[64,128], index: 2, kind: input, shape index: {}]
  %s3 = inlined_call_operand.vmem [shape: f32[16,1], index: 3, kind: output, shape index: {}]
  %s4 = sld [smem:[#allocation0]]
  $region56: #{tpu_custom_call.1} parent=0
    _
  %s6 = ssub.s32 1, %s4
  %s7 = scalar_select 0, %s6, %s4
  %9 = dma.hbm_to_smem %s0, 16, [#allocation4], [#allocation3]
  %10 = dma.done [#allocation3], 16
  %11 = sfence
  $region1: #{tpu_custom_call.1} parent=0
    #allocation5 [shape = 'u8[8192]{0}', space=vmem, size = 0x2000, scoped, tag = 'input window, operand 1']
    #allocation6 [shape = 's32[2]{0}', space=sflag, size = 0x8, scoped, tag = 'scoped memory for tpu_custom_call.1']
    #allocation7 [shape = 'u8[32768]{0}', space=vmem, size = 0x8000, scoped, tag = 'input window, operand 2, single buffered']
    #allocation8 [shape = 's32[1]{0}', space=sflag, size = 0x4, scoped, tag = 'scoped memory for tpu_custom_call.1']
    %12 = vsyncpa [#allocation6], 0
    %s13 = scalar_lea.sflag [#allocation6], 1
    %14 = vsyncpa %s13, 0
    %15 = vsyncpa [#allocation8], 0
    loop: start=0, step=1, limit=4
    $region2: #{tpu_custom_call.1} parent=1 // loop_pre_header
      _
    $region3: #{tpu_custom_call.1} parent=1 // loop_header
      %s17 = sphi 0, %s21
      %p18 = scmp.ge.s32.totalorder %s17, 4
      %s27 = sphi 0, %s29
      %s30 = sphi 0, %s27
      %s31 = sphi 0, %s30
      %s47 = sphi 0, %s31
      %s51 = sphi 0, %s51
      %s53 = sphi 0, %s51
      %s54 = sphi 0, %s53
      %s68 = sphi 0, %s54
      %s74 = sphi 0, %s76
      %s77 = sphi 0, %s74
      %s78 = sphi 0, %s77
      %s94 = sphi 0, %s78
    $region4: #{tpu_custom_call.1} parent=1 // loop_header_branch
      %20 = sbr.rel (%p18) target = $region8
    $region5: #{tpu_custom_call.1} parent=1 // loop_body
      %s22 = ssub.s32 %s17, 1
      %s23 = ssub.s32 %s17, 2
      %s24 = sadd.s32 %s17, 1
      %s25 = ssub.s32 %s17, %s24
      %p26 = scmp.eq.s32.totalorder %s25, 0
      %s28 = sadd.s32 %s27, 1
      %s29 = scalar_select %p26, %s27, %s28
      %p32 = pneg %p26
      %p33 = scmp.eq.s32.totalorder %s17, 1
      %p34 = por %p32, %p33
      %p35 = scmp.ne.s32.totalorder %s27, %s30
      %p36 = scmp.eq.s32.totalorder %s17, 0
      %p37 = por %p35, %p36
      %p38 = scmp.ne.s32.totalorder %s27, %s30
      %p39 = scmp.eq.s32.totalorder %s22, 1
      %p40 = por %p38, %p39
      %p41 = scmp.ne.s32.totalorder %s30, %s31
      %p42 = scmp.eq.s32.totalorder %s22, 0
      %p43 = por %p41, %p42
      %p44 = scmp.ne.s32.totalorder %s30, %s31
      %p45 = scmp.eq.s32.totalorder %s23, 1
      %p46 = por %p44, %p45
      %p48 = scmp.ne.s32.totalorder %s31, %s47
      %p49 = scmp.eq.s32.totalorder %s23, 0
      %p50 = por %p48, %p49
      %s52 = sadd.s32 %s51, 1
      %p55 = scmp.eq.s32.totalorder %s17, 1
      %p56 = scmp.ne.s32.totalorder %s51, %s53
      %p57 = scmp.eq.s32.totalorder %s17, 0
      %p58 = por %p56, %p57
      %p59 = scmp.ne.s32.totalorder %s51, %s53
      %p60 = scmp.eq.s32.totalorder %s22, 1
      %p61 = por %p59, %p60
      %p62 = scmp.ne.s32.totalorder %s53, %s54
      %p63 = scmp.eq.s32.totalorder %s22, 0
      %p64 = por %p62, %p63
      %p65 = scmp.ne.s32.totalorder %s53, %s54
      %p66 = scmp.eq.s32.totalorder %s23, 1
      %p67 = por %p65, %p66
      %p69 = scmp.ne.s32.totalorder %s54, %s68
      %p70 = scmp.eq.s32.totalorder %s23, 0
      %p71 = por %p69, %p70
      %s72 = ssub.s32 %s17, %s24
      %p73 = scmp.eq.s32.totalorder %s72, 0
      %s75 = sadd.s32 %s74, 1
      %s76 = scalar_select %p73, %s74, %s75
      %p79 = pneg %p73
      %p80 = scmp.eq.s32.totalorder %s17, 1
      %p81 = por %p79, %p80
      %p82 = scmp.ne.s32.totalorder %s74, %s77
      %p83 = scmp.eq.s32.totalorder %s17, 0
      %p84 = por %p82, %p83
      %p85 = scmp.ne.s32.totalorder %s74, %s77
      %p86 = scmp.eq.s32.totalorder %s22, 1
      %p87 = por %p85, %p86
      %p88 = scmp.ne.s32.totalorder %s77, %s78
      %p89 = scmp.eq.s32.totalorder %s22, 0
      %p90 = por %p88, %p89
      %p91 = scmp.ne.s32.totalorder %s77, %s78
      %p92 = scmp.eq.s32.totalorder %s23, 1
      %p93 = por %p91, %p92
      %p95 = scmp.ne.s32.totalorder %s78, %s94
      %p96 = scmp.eq.s32.totalorder %s23, 0
      %p97 = por %p95, %p96
      %p98 = scmp.le.s32.totalorder 1, %s17
      %p99 = scmp.lt.s32.totalorder %s17, 3
      %p100 = pnand %p98, %p99
      %p101 = pneg %p100
      // Predicated region
      $region9: #{tpu_custom_call.1} parent=5 // pred_check
        _
      $region10: #{tpu_custom_call.1} parent=5 // pred_check_branch
        %103 = sbr.rel (%p100) target = $region12
      $region11: #{tpu_custom_call.1} parent=5 // pred_region
        %s104 = ssub.s32 %s17, 1
        // Predicated region
        $region13: #{tpu_custom_call.1} parent=11 // pred_check
          %p105 = pneg %p64
        $region14: #{tpu_custom_call.1} parent=11 // pred_check_branch
          %107 = sbr.rel (%p105) target = $region16
        $region15: #{tpu_custom_call.1} parent=11 // pred_region
          %s109 = ssub.s32 1024, 1024
          %110 = vsyncadd [#allocation8], %s109
          %s111 = sshll.u32 [#allocation7], 4
          %s112 = int_to_ptr.vmem [resolvable:$true] %s111
          %117 = dma.hbm_to_vmem [thread:$0]  %s2, 1024, %s112, [#allocation8], 128, 128, 8
        $region16: #{tpu_custom_call.1} parent=11 // pred_fallthru
          _
      $region12: #{tpu_custom_call.1} parent=5 // pred_fallthru
        _
      %p118 = scmp.lt.s32.totalorder %s17, 2
      // Predicated region
      $region17: #{tpu_custom_call.1} parent=5 // pred_check
        %p119 = pneg %p118
      $region18: #{tpu_custom_call.1} parent=5 // pred_check_branch
        %121 = sbr.rel (%p119) target = $region20
      $region19: #{tpu_custom_call.1} parent=5 // pred_region
        // Predicated region
        $region21: #{tpu_custom_call.1} parent=19 // pred_check
          %p122 = pneg %p37
        $region22: #{tpu_custom_call.1} parent=19 // pred_check_branch
          %124 = sbr.rel (%p122) target = $region24
        $region23: #{tpu_custom_call.1} parent=19 // pred_region
          %s125 = sand.u32 %s27, 1
          %s126 = scalar_lea.sflag [#allocation6], %s125
          %s127 = sand.u32 %s27, 1
          %s128 = smul.addr %s127, 8
          %s129 = scalar_lea.vmem [#allocation5], %s128
          %s131 = ssub.s32 128, 128
          %132 = vsyncadd %s126, %s131
          %s133 = smul.addr %s17, 128
          %s134 = scalar_lea.hbm %s1, %s133
          %s136 = sshll.u32 %s129, 4
          %s137 = int_to_ptr.vmem [resolvable:$true] %s136
          %139 = dma.hbm_to_vmem [thread:$0]  %s134, 128, %s137, %s126
        $region24: #{tpu_custom_call.1} parent=19 // pred_fallthru
          _
      $region20: #{tpu_custom_call.1} parent=5 // pred_fallthru
        _
      %p140 = scmp.le.s32.totalorder 1, %s17
      %p141 = scmp.lt.s32.totalorder %s17, 3
      %p142 = pnand %p140, %p141
      %p143 = pneg %p142
      // Predicated region
      $region25: #{tpu_custom_call.1} parent=5 // pred_check
        _
      $region26: #{tpu_custom_call.1} parent=5 // pred_check_branch
        %145 = sbr.rel (%p142) target = $region28
      $region27: #{tpu_custom_call.1} parent=5 // pred_region
        %s146 = ssub.s32 %s17, 1
        %s147 = sand.u32 %s30, 1
        %s148 = scalar_lea.sflag [#allocation6], %s147
        %s149 = sand.u32 %s30, 1
        %s150 = smul.addr %s149, 8
        %s151 = scalar_lea.vmem [#allocation5], %s150
        // Predicated region
        $region29: #{tpu_custom_call.1} parent=27 // pred_check
          %p152 = pneg %p43
        $region30: #{tpu_custom_call.1} parent=27 // pred_check_branch
          %154 = sbr.rel (%p152) target = $region32
        $region31: #{tpu_custom_call.1} parent=27 // pred_region
          %155 = dma.done %s148, 128
        $region32: #{tpu_custom_call.1} parent=27 // pred_fallthru
          _
        // Predicated region
        $region33: #{tpu_custom_call.1} parent=27 // pred_check
          %p156 = pneg %p64
        $region34: #{tpu_custom_call.1} parent=27 // pred_check_branch
          %158 = sbr.rel (%p156) target = $region36
        $region35: #{tpu_custom_call.1} parent=27 // pred_region
          %159 = dma.done [#allocation8], 1024
        $region36: #{tpu_custom_call.1} parent=27 // pred_fallthru
          _
        %s160 = sand.u32 %s30, 1
        %s161 = scalar_lea.sflag [#allocation6], %s160
        %s162 = sand.u32 %s30, 1
        %s163 = smul.addr %s162, 8
        %s164 = scalar_lea.vmem [#allocation5], %s163
        %p165 = pneg %p43
        %p166 = pneg %p40
        %p167 = pneg %p64
        %p168 = pneg %p61
        %p169 = pneg %p90
        %p170 = pneg %p87
        %p171 = scmp.lt.s32.totalorder %s22, 1
        %s172 = scalar_select %p171, %s22, 1
        %s173 = smul.addr %s172, 8
        %s174 = scalar_lea.vmem %s3, %s173
        %p175 = scmp.lt.s32.totalorder %s22, 1
        %s176 = scalar_select %p175, %s22, 1
        %s177 = smul.addr %s176, 8
        %s178 = scalar_lea.vmem %s3, %s177
        %s179 = smul.u32 %s22, 8
        loop: start=0, step=1, limit=8
        $region37: #{tpu_custom_call.1} parent=27 // loop_pre_header
          _
        $region38: #{tpu_custom_call.1} parent=27 // loop_header
          %s181 = sphi 0, %s185
          %p182 = scmp.ge.s32.totalorder %s181, 8
        $region39: #{tpu_custom_call.1} parent=27 // loop_header_branch
          %184 = sbr.rel (%p182) target = $region43
        $region40: #{tpu_custom_call.1} parent=27 // loop_body
          %s186 = sadd.s32 %s179, %s181
          %s187 = sld [smem:[#allocation4 + %s186]]
          %s188 = scalar_lea.vmem [#allocation7], %s187
          %v189 = vld [vmem:[%s188] sm:$0x1]
          %s190 = scalar_lea.vmem [#allocation2], %s181
          %191 = vst [vmem:[%s190] sm:$0x1] %v189
        $region41: #{tpu_custom_call.1} parent=27 // loop_footer
          %s185 = sadd.s32 1, %s181
        $region42: #{tpu_custom_call.1} parent=27 // loop_footer_branch
          %180 = sbr.rel target = $region38
        $region43: #{tpu_custom_call.1} parent=27 // loop_exit
          _
        %v192 = vld [vmem:[%s151] sm:$0xff]
        %v193 = vld [vmem:[#allocation2] sm:$0xff]
        %v194 = vlaneseq
        %v195 = vshrl.u32 %v194, 7
        %v196 = vstv %s179
        %v197 = vadd.s32 %v196, %v195
        %vm198 = vcmp.lt.s32.totalorder %v197, 16
        %v199 = vsel %vm198, 1, 0
        %vm200 = vcmp.eq.s32.totalorder %v199, 1
        %v201 = vsel %vm200, %v192, 0.0
        %v202 = vsel %vm200, %v193, 0.0
        %203 = vmax.xlane.f32.xlu0 %v201
        %v204 = vpop.xlane.xlu0 %203
        %v205 = vsub.f32 %v201, %v204
        %v206 = vmul.f32 %v205, 1.442695
        %v207 = vpow.pop %v206
        %208 = vadd.xlane.f32.xlu0 %v207
        %v209 = vpop.xlane.xlu0 %208
        %v210 = vlog2.pop %v209
        %v211 = vmul.f32 %v210, 0.6931472
        %v212 = vsub.f32 %v205, %v211
        %v213 = vmul.f32 %v212, %v202
        %214 = vadd.xlane.f32.xlu0 %v213
        %v215 = vpop.xlane.xlu0 %214
        %v216 = vsel %vm198, %v215, 0.0
        %vm217 = vcmask 7168
        %218 = vst.msk [vmem:[%s178] sm:$0xff] %vm217, %v216
        %p219 = scmp.lt.s32.totalorder %s22, 1
        %s220 = scalar_select %p219, %s22, 1
        %s221 = smul.addr %s220, 8
        %s222 = scalar_lea.vmem %s3, %s221
        // Predicated region
        $region44: #{tpu_custom_call.1} parent=27 // pred_check
          %p223 = pneg %p87
        $region45: #{tpu_custom_call.1} parent=27 // pred_check_branch
          %225 = sbr.rel (%p223) target = $region47
        $region46: #{tpu_custom_call.1} parent=27 // pred_region
          _
        $region47: #{tpu_custom_call.1} parent=27 // pred_fallthru
          _
      $region28: #{tpu_custom_call.1} parent=5 // pred_fallthru
        _
      %p226 = scmp.le.s32.totalorder 2, %s17
      // Predicated region
      $region48: #{tpu_custom_call.1} parent=5 // pred_check
        %p227 = pneg %p226
      $region49: #{tpu_custom_call.1} parent=5 // pred_check_branch
        %229 = sbr.rel (%p227) target = $region51
      $region50: #{tpu_custom_call.1} parent=5 // pred_region
        %s230 = ssub.s32 %s17, 2
        // Predicated region
        $region52: #{tpu_custom_call.1} parent=50 // pred_check
          %p231 = pneg %p93
        $region53: #{tpu_custom_call.1} parent=50 // pred_check_branch
          %233 = sbr.rel (%p231) target = $region55
        $region54: #{tpu_custom_call.1} parent=50 // pred_region
          %p234 = scmp.lt.s32.totalorder %s23, 1
          %s235 = scalar_select %p234, %s23, 1
          %s236 = smul.addr %s235, 8
          %s237 = scalar_lea.vmem %s3, %s236
        $region55: #{tpu_custom_call.1} parent=50 // pred_fallthru
          _
      $region51: #{tpu_custom_call.1} parent=5 // pred_fallthru
        _
    $region6: #{tpu_custom_call.1} parent=1 // loop_footer
      %s21 = sadd.s32 1, %s17
    $region7: #{tpu_custom_call.1} parent=1 // loop_footer_branch
      %16 = sbr.rel target = $region3
    $region8: #{tpu_custom_call.1} parent=1 // loop_exit
      _
    %238 = vsyncpa [#allocation6], 1
    %s239 = scalar_lea.sflag [#allocation6], 1
    %240 = vsyncpa %s239, 1
    %241 = vsyncpa [#allocation8], 1

</llo_original>
